<compile_context>
chip_gen: v6e
topology: v6e:2x2x1
jax: 0.10.0
libtpu: 0.0.40
codegen_flags: <defaults>
</compile_context>

<pallas_src>
import functools

import jax
import jax.numpy as jnp
from jax.experimental import pallas as pl
from jax.experimental.pallas import tpu as pltpu


def _mlp_kernel(sc_ref, xt_ref, p_ref, o_ref, *, H, D_in):
    """Fused 5-layer MLP for one lane tile, in [feature, batch] layout.

    sc_ref : SMEM (1, 2)  -> [scale, b5]
    xt_ref : VMEM (D_in, tn)   x^T tile
    p_ref  : VMEM (4H, 128)    packed parameter slab:
               rows [0,H)   cols [0,H)        : W2   (PyTorch [out, in] layout)
               rows [H,2H)  cols [0,H)        : W3
               rows [2H,3H) cols [0,H)        : W4
               rows [3H,4H) cols [0,D_in)     : W1
               rows [3H,4H) col  D_in+k       : b1..b4 (k=0..3), W5^T column (k=4)
    o_ref  : VMEM (1, tn)      y^T tile
    """
    s = sc_ref[0, 0]
    b5 = sc_ref[0, 1]
    x = xt_ref[...]                                   # [D_in, tn]

    w2 = p_ref[0:H, 0:H]
    w3 = p_ref[H:2 * H, 0:H]
    w4 = p_ref[2 * H:3 * H, 0:H]
    r0 = 3 * H
    w1 = p_ref[r0:r0 + H, 0:D_in]                     # [H, D_in]
    b1 = p_ref[r0:r0 + H, D_in:D_in + 1]              # [H, 1]
    b2 = p_ref[r0:r0 + H, D_in + 1:D_in + 2]
    b3 = p_ref[r0:r0 + H, D_in + 2:D_in + 3]
    b4 = p_ref[r0:r0 + H, D_in + 3:D_in + 4]
    w5c = p_ref[r0:r0 + H, D_in + 4:D_in + 5]         # [H, 1]  (= W5^T)

    # Layer 1: contraction depth D_in (=2) is tiny -> VPU broadcast-FMAs,
    # no degenerate MXU fill/drain.
    pre1 = b1 + w1[:, 0:1] * x[0:1, :]
    for d in range(1, D_in):
        pre1 = pre1 + w1[:, d:d + 1] * x[d:d + 1, :]
    h = jnp.tanh(s * pre1)                            # [H, tn]

    # Layers 2-4: dense HxH MXU dots in [feature, batch] layout; bias is a
    # lane-broadcast column add.
    h = jnp.tanh(s * (jnp.dot(w2, h, preferred_element_type=jnp.float32) + b2))
    h = jnp.tanh(s * (jnp.dot(w3, h, preferred_element_type=jnp.float32) + b3))
    h = jnp.tanh(s * (jnp.dot(w4, h, preferred_element_type=jnp.float32) + b4))

    # Layer 5: D_out == 1 -> VPU multiply + sublane reduce (XLU), lane-dense
    # [1, tn] output store.
    y = s * (jnp.sum(w5c * h, axis=0, keepdims=True) + b5)
    o_ref[...] = y.astype(o_ref.dtype)


@functools.partial(jax.jit, static_argnames=("tn",))
def homo_forward(x, params, scale, *, tn=128):
    """Pallas forward pass.

    x      : [N, D_in] float32
    params : dict of PyTorch-layout weights (w_i: [out, in]) and 1-D biases.
    scale  : scalar (n * a1).
    tn     : lane tile over the batch dimension (multiple of 128, divides N).
    """
    N, D_in = x.shape
    H = params["w2"].shape[0]
    D_out = params["w5"].shape[0]
    assert D_out == 1, "kernel is specialized for the module's D_out == 1"
    assert H % 8 == 0 and H <= 128
    assert D_in + 5 <= 128
    assert tn % 128 == 0 and N % tn == 0, "batch must tile into lane tiles of 128"

    # Pack all parameters into a single lane-aligned f32 slab [4H, 128].
    PROWS, PCOLS = 4 * H, 128
    slab = jnp.zeros((PROWS, PCOLS), jnp.float32)
    slab = slab.at[0:H, 0:H].set(params["w2"].astype(jnp.float32))
    slab = slab.at[H:2 * H, 0:H].set(params["w3"].astype(jnp.float32))
    slab = slab.at[2 * H:3 * H, 0:H].set(params["w4"].astype(jnp.float32))
    r0 = 3 * H
    slab = slab.at[r0:r0 + H, 0:D_in].set(params["w1"].astype(jnp.float32))
    slab = slab.at[r0:r0 + H, D_in].set(params["b1"].reshape(H).astype(jnp.float32))
    slab = slab.at[r0:r0 + H, D_in + 1].set(params["b2"].reshape(H).astype(jnp.float32))
    slab = slab.at[r0:r0 + H, D_in + 2].set(params["b3"].reshape(H).astype(jnp.float32))
    slab = slab.at[r0:r0 + H, D_in + 3].set(params["b4"].reshape(H).astype(jnp.float32))
    slab = slab.at[r0:r0 + H, D_in + 4].set(params["w5"].reshape(H).astype(jnp.float32))

    # Scalars (scale, b5) ride in SMEM.
    sc = jnp.stack([jnp.asarray(scale, jnp.float32),
                    params["b5"].reshape(()).astype(jnp.float32)]).reshape(1, 2)

    xt = x.astype(jnp.float32).T                      # [D_in, N] : batch on lanes

    flops = 2 * N * (D_in * H + 3 * H * H + H * D_out)
    transcendentals = 4 * N * H
    bytes_accessed = 4 * (xt.size + N * D_out + PROWS * PCOLS + 2)
    cost = pl.CostEstimate(flops=flops,
                           transcendentals=transcendentals,
                           bytes_accessed=bytes_accessed)

    grid_spec = pltpu.PrefetchScalarGridSpec(
        num_scalar_prefetch=0,
        grid=(N // tn,),
        in_specs=[
            pl.BlockSpec((1, 2), lambda i: (0, 0), memory_space=pltpu.SMEM),  # scalars
            pl.BlockSpec((D_in, tn), lambda i: (0, i)),                       # x^T tile
            pl.BlockSpec((PROWS, PCOLS), lambda i: (0, 0)),                   # param slab
        ],
        out_specs=pl.BlockSpec((D_out, tn), lambda i: (0, i)),                # y^T tile
    )

    yt = pl.pallas_call(
        functools.partial(_mlp_kernel, H=H, D_in=D_in),
        out_shape=jax.ShapeDtypeStruct((D_out, N), jnp.float32),
        grid_spec=grid_spec,
        compiler_params=pltpu.CompilerParams(
            dimension_semantics=("parallel",)),
        cost_estimate=cost,
    )(sc, xt, slab)

    return yt.T                                       # back to [N, D_out]


def init_params(key, D_in, H, D_out):
    """Deterministic init matching the PyTorch module's normal_ initializers.
    Weights are stored in PyTorch layout: [out_features, in_features]."""
    ks = jax.random.split(key, 10)

    def nrm(k, shape, std):
        return (std * jax.random.normal(k, shape)).astype(jnp.float32)

    return {
        "w1": nrm(ks[0], (H, D_in), (2.0 / (D_in + H)) ** 0.5),
        "b1": nrm(ks[1], (H,), 1.0),
        "w2": nrm(ks[2], (H, H), (2.0 / (H + H)) ** 0.5),
        "b2": nrm(ks[3], (H,), 1.0),
        "w3": nrm(ks[4], (H, H), (2.0 / (H + H)) ** 0.5),
        "b3": nrm(ks[5], (H,), 1.0),
        "w4": nrm(ks[6], (H, H), (2.0 / (H + H)) ** 0.5),
        "b4": nrm(ks[7], (H,), 1.0),
        "w5": nrm(ks[8], (D_out, H), (2.0 / (H + D_out)) ** 0.5),
        "b5": nrm(ks[9], (D_out,), 1.0),
    }


def homo_forward_ref(x, p, s):
    """Pure-JAX reference mirroring the PyTorch forward (y = x @ W^T + b)."""
    h = jnp.tanh(s * (x @ p["w1"].T + p["b1"]))
    h = jnp.tanh(s * (h @ p["w2"].T + p["b2"]))
    h = jnp.tanh(s * (h @ p["w3"].T + p["b3"]))
    h = jnp.tanh(s * (h @ p["w4"].T + p["b4"]))
    return s * (h @ p["w5"].T + p["b5"])


if __name__ == "__main__":
    # hyper2D uses 2-D coordinate inputs: D_in=2, H=32, D_out=1
    D_in, H, D_out = 2, 32, 1
    N = 256  # batch of collocation points

    key = jax.random.PRNGKey(0)
    kx, kp = jax.random.split(key)
    x = jax.random.uniform(kx, (N, D_in), dtype=jnp.float32,
                           minval=0.0, maxval=4.0)
    params = init_params(kp, D_in, H, D_out)

    a1 = 0.1
    n = 1.0 / a1
    scale = n * a1  # == 1.0, as in the PyTorch module

    out = homo_forward(x, params, scale, tn=128)
    out = jax.block_until_ready(out)

    ref = homo_forward_ref(x, params, scale)
    assert out.shape == (N, D_out)
    err = float(jnp.max(jnp.abs(out - ref)))
    assert jnp.allclose(out, ref, atol=1e-4, rtol=1e-4), f"max abs err {err}"

    print("KERNEL_OK")
</pallas_src>

<mosaic_0001>
module attributes {stable_mosaic.version = 11 : i64} {
  func.func @_mlp_kernel(%arg0: i32, %arg1: memref<1x2xf32, #tpu.memory_space<smem>>, %arg2: memref<2x128xf32, #tpu.memory_space<vmem>>, %arg3: memref<128x128xf32, #tpu.memory_space<vmem>>, %arg4: memref<1x128xf32, #tpu.memory_space<vmem>>) attributes {dimension_semantics = [#tpu.dimension_semantics<parallel>], iteration_bounds = array<i64: 2>, scalar_prefetch = 0 : i64, scratch_operands = 0 : i64, tpu.core_type = #tpu.core_type<tc>, window_params = [{transform_indices = @transform_0, window_bounds = array<i64: 1, 2>}, {transform_indices = @transform_1, window_bounds = array<i64: 2, 128>}, {pipeline_mode = #tpu.pipeline_mode<synchronous>, transform_indices = @transform_2, window_bounds = array<i64: 128, 128>}, {transform_indices = @transform_3, window_bounds = array<i64: 1, 128>}]} {
    %c0 = arith.constant 0 : index
    %c0_0 = arith.constant 0 : index
    %0 = memref.load %arg1[%c0, %c0_0] : memref<1x2xf32, #tpu.memory_space<smem>>
    %c0_1 = arith.constant 0 : index
    %c1 = arith.constant 1 : index
    %1 = memref.load %arg1[%c0_1, %c1] : memref<1x2xf32, #tpu.memory_space<smem>>
    %c0_2 = arith.constant 0 : index
    %c0_3 = arith.constant 0 : index
    %2 = vector.load %arg2[%c0_2, %c0_3] : memref<2x128xf32, #tpu.memory_space<vmem>>, vector<2x128xf32>
    %c0_4 = arith.constant 0 : index
    %c0_5 = arith.constant 0 : index
    %3 = vector.load %arg3[%c0_4, %c0_5] : memref<128x128xf32, #tpu.memory_space<vmem>>, vector<32x32xf32>
    %c32 = arith.constant 32 : index
    %c0_6 = arith.constant 0 : index
    %4 = vector.load %arg3[%c32, %c0_6] : memref<128x128xf32, #tpu.memory_space<vmem>>, vector<32x32xf32>
    %c64 = arith.constant 64 : index
    %c0_7 = arith.constant 0 : index
    %5 = vector.load %arg3[%c64, %c0_7] : memref<128x128xf32, #tpu.memory_space<vmem>>, vector<32x32xf32>
    %c96 = arith.constant 96 : index
    %c0_8 = arith.constant 0 : index
    %6 = vector.load %arg3[%c96, %c0_8] : memref<128x128xf32, #tpu.memory_space<vmem>>, vector<32x2xf32>
    %c96_9 = arith.constant 96 : index
    %c2 = arith.constant 2 : index
    %7 = vector.load %arg3[%c96_9, %c2] : memref<128x128xf32, #tpu.memory_space<vmem>>, vector<32x1xf32>
    %c96_10 = arith.constant 96 : index
    %c3 = arith.constant 3 : index
    %8 = vector.load %arg3[%c96_10, %c3] : memref<128x128xf32, #tpu.memory_space<vmem>>, vector<32x1xf32>
    %c96_11 = arith.constant 96 : index
    %c4 = arith.constant 4 : index
    %9 = vector.load %arg3[%c96_11, %c4] : memref<128x128xf32, #tpu.memory_space<vmem>>, vector<32x1xf32>
    %c96_12 = arith.constant 96 : index
    %c5 = arith.constant 5 : index
    %10 = vector.load %arg3[%c96_12, %c5] : memref<128x128xf32, #tpu.memory_space<vmem>>, vector<32x1xf32>
    %c96_13 = arith.constant 96 : index
    %c6 = arith.constant 6 : index
    %11 = vector.load %arg3[%c96_13, %c6] : memref<128x128xf32, #tpu.memory_space<vmem>>, vector<32x1xf32>
    %12 = vector.extract_strided_slice %6 {offsets = [0, 0], sizes = [32, 1], strides = [1, 1]} : vector<32x2xf32> to vector<32x1xf32>
    %13 = vector.extract_strided_slice %2 {offsets = [0, 0], sizes = [1, 128], strides = [1, 1]} : vector<2x128xf32> to vector<1x128xf32>
    %14 = vector.broadcast %12 : vector<32x1xf32> to vector<32x128xf32>
    %15 = vector.broadcast %13 : vector<1x128xf32> to vector<32x128xf32>
    %16 = arith.mulf %14, %15 : vector<32x128xf32>
    %17 = vector.broadcast %7 : vector<32x1xf32> to vector<32x128xf32>
    %18 = arith.addf %17, %16 : vector<32x128xf32>
    %19 = vector.extract_strided_slice %6 {offsets = [0, 1], sizes = [32, 1], strides = [1, 1]} : vector<32x2xf32> to vector<32x1xf32>
    %20 = vector.extract_strided_slice %2 {offsets = [1, 0], sizes = [1, 128], strides = [1, 1]} : vector<2x128xf32> to vector<1x128xf32>
    %21 = vector.broadcast %19 : vector<32x1xf32> to vector<32x128xf32>
    %22 = vector.broadcast %20 : vector<1x128xf32> to vector<32x128xf32>
    %23 = arith.mulf %21, %22 : vector<32x128xf32>
    %24 = arith.addf %18, %23 : vector<32x128xf32>
    %25 = vector.broadcast %0 : f32 to vector<32x128xf32>
    %26 = arith.mulf %25, %24 : vector<32x128xf32>
    %27 = math.tanh %26 : vector<32x128xf32>
    %cst = arith.constant dense<0.000000e+00> : vector<32x128xf32>
    %28 = tpu.matmul %3, %27, %cst {dimension_numbers = #tpu.dot_dimension_numbers<[1], [0], [0], [1], [0, 0, 1, 1], [], []>} : vector<32x32xf32>, vector<32x128xf32>, vector<32x128xf32> -> vector<32x128xf32>
    %29 = vector.broadcast %8 : vector<32x1xf32> to vector<32x128xf32>
    %30 = arith.addf %28, %29 : vector<32x128xf32>
    %31 = vector.broadcast %0 : f32 to vector<32x128xf32>
    %32 = arith.mulf %31, %30 : vector<32x128xf32>
    %33 = math.tanh %32 : vector<32x128xf32>
    %cst_14 = arith.constant dense<0.000000e+00> : vector<32x128xf32>
    %34 = tpu.matmul %4, %33, %cst_14 {dimension_numbers = #tpu.dot_dimension_numbers<[1], [0], [0], [1], [0, 0, 1, 1], [], []>} : vector<32x32xf32>, vector<32x128xf32>, vector<32x128xf32> -> vector<32x128xf32>
    %35 = vector.broadcast %9 : vector<32x1xf32> to vector<32x128xf32>
    %36 = arith.addf %34, %35 : vector<32x128xf32>
    %37 = vector.broadcast %0 : f32 to vector<32x128xf32>
    %38 = arith.mulf %37, %36 : vector<32x128xf32>
    %39 = math.tanh %38 : vector<32x128xf32>
    %cst_15 = arith.constant dense<0.000000e+00> : vector<32x128xf32>
    %40 = tpu.matmul %5, %39, %cst_15 {dimension_numbers = #tpu.dot_dimension_numbers<[1], [0], [0], [1], [0, 0, 1, 1], [], []>} : vector<32x32xf32>, vector<32x128xf32>, vector<32x128xf32> -> vector<32x128xf32>
    %41 = vector.broadcast %10 : vector<32x1xf32> to vector<32x128xf32>
    %42 = arith.addf %40, %41 : vector<32x128xf32>
    %43 = vector.broadcast %0 : f32 to vector<32x128xf32>
    %44 = arith.mulf %43, %42 : vector<32x128xf32>
    %45 = math.tanh %44 : vector<32x128xf32>
    %46 = vector.broadcast %11 : vector<32x1xf32> to vector<32x128xf32>
    %47 = arith.mulf %46, %45 : vector<32x128xf32>
    %cst_16 = arith.constant dense<0.000000e+00> : vector<128xf32>
    %48 = vector.multi_reduction <add>, %47, %cst_16 [0] : vector<32x128xf32> to vector<128xf32>
    %49 = vector.shape_cast %48 : vector<128xf32> to vector<1x128xf32>
    %50 = vector.broadcast %1 : f32 to vector<1x128xf32>
    %51 = arith.addf %49, %50 : vector<1x128xf32>
    %52 = vector.broadcast %0 : f32 to vector<1x128xf32>
    %53 = arith.mulf %52, %51 : vector<1x128xf32>
    %c0_17 = arith.constant 0 : index
    %c0_18 = arith.constant 0 : index
    %54 = vector.load %arg4[%c0_17, %c0_18] : memref<1x128xf32, #tpu.memory_space<vmem>>, vector<1x128xf32>
    tpu.vector_store %arg4[%c0_17, %c0_18], %53 {strides = array<i32>} : memref<1x128xf32, #tpu.memory_space<vmem>>, vector<1x128xf32>,
    return
  }
  func.func @transform_0(%arg0: i32) -> (i32, i32) {
    %c0_i32 = arith.constant 0 : i32
    %c0_i32_0 = arith.constant 0 : i32
    %c0_i32_1 = arith.constant 0 : i32
    return %c0_i32, %c0_i32_0 : i32, i32
  }
  func.func @transform_1(%arg0: i32) -> (i32, i32) {
    %c0_i32 = arith.constant 0 : i32
    %c0_i32_0 = arith.constant 0 : i32
    return %c0_i32, %arg0 : i32, i32
  }
  func.func @transform_2(%arg0: i32) -> (i32, i32) {
    %c0_i32 = arith.constant 0 : i32
    %c0_i32_0 = arith.constant 0 : i32
    %c0_i32_1 = arith.constant 0 : i32
    return %c0_i32, %c0_i32_0 : i32, i32
  }
  func.func @transform_3(%arg0: i32) -> (i32, i32) {
    %c0_i32 = arith.constant 0 : i32
    %c0_i32_0 = arith.constant 0 : i32
    return %c0_i32, %arg0 : i32, i32
  }
}

</mosaic_0001>

<llo_original>
// kernel: homo_forward.1
$region0: #{homo_forward.1}
  #allocation0 [shape = 'u32[]', space=smem, size = 0x4, offset = 0x4, fixed_abs, tag = 'smem constant byte address 0x4 - core index']
  #allocation1 [shape = 'u32[144,128]{1,0:T(1,128)}', space=vmem, size = 0x12000, scoped, tag = 'internal scratch']
  %s0 = inlined_call_operand.vmem [shape: f32[1,2], index: 0, kind: input, shape index: {}]
  %s1 = inlined_call_operand.vmem [shape: f32[2,256], index: 1, kind: input, shape index: {}]
  %s2 = inlined_call_operand.vmem [shape: f32[128,128], index: 2, kind: input, shape index: {}]
  %s3 = inlined_call_operand.hbm [shape: f32[1,256], index: 3, kind: output, shape index: {}]
  %s4 = sld [smem:[#allocation0]]
  $region49: #{homo_forward.1} parent=0
    _
  %s6 = ssub.s32 1, %s4
  %s7 = scalar_select 0, %s6, %s4
  $region1: #{homo_forward.1} parent=0
    #allocation2 [shape = 'u8[512]{0}', space=smem, size = 0x200, scoped, tag = 'input window, operand 0, single buffered']
    #allocation3 [shape = 's32[2]{0}', space=sflag, size = 0x8, scoped, tag = 'scoped memory for homo_forward.1']
    #allocation4 [shape = 's32[2]{0}', space=sflag, size = 0x8, scoped, tag = 'scoped memory for homo_forward.1']
    #allocation5 [shape = 'u8[1024]{0}', space=vmem, size = 0x400, scoped, tag = 'output window, operand 0']
    %8 = vsyncpa [#allocation4], 0
    %9 = vsyncpa [#allocation3], 0
    %s10 = scalar_lea.sflag [#allocation3], 1
    %11 = vsyncpa %s10, 0
    loop: start=0, step=1, limit=4
    $region2: #{homo_forward.1} parent=1 // loop_pre_header
      _
    $region3: #{homo_forward.1} parent=1 // loop_header
      %s13 = sphi 0, %s17
      %p14 = scmp.ge.s32.totalorder %s13, 4
      %s21 = sphi 0, %s21
      %s23 = sphi 0, %s21
      %s24 = sphi 0, %s23
      %s38 = sphi 0, %s24
      %s44 = sphi 0, %s46
      %s47 = sphi 0, %s44
      %s48 = sphi 0, %s47
      %s64 = sphi 0, %s48
      %s68 = sphi 0, %s68
      %s70 = sphi 0, %s68
      %s71 = sphi 0, %s70
      %s85 = sphi 0, %s71
      %s91 = sphi 0, %s93
      %s94 = sphi 0, %s91
      %s95 = sphi 0, %s94
      %s111 = sphi 0, %s95
    $region4: #{homo_forward.1} parent=1 // loop_header_branch
      %16 = sbr.rel (%p14) target = $region8
    $region5: #{homo_forward.1} parent=1 // loop_body
      %s18 = ssub.s32 %s13, 1
      %s19 = ssub.s32 %s13, 2
      %s20 = sadd.s32 %s13, 1
      %s22 = sadd.s32 %s21, 1
      %p25 = scmp.eq.s32.totalorder %s13, 1
      %p26 = scmp.ne.s32.totalorder %s21, %s23
      %p27 = scmp.eq.s32.totalorder %s13, 0
      %p28 = por %p26, %p27
      %p29 = scmp.ne.s32.totalorder %s21, %s23
      %p30 = scmp.eq.s32.totalorder %s18, 1
      %p31 = por %p29, %p30
      %p32 = scmp.ne.s32.totalorder %s23, %s24
      %p33 = scmp.eq.s32.totalorder %s18, 0
      %p34 = por %p32, %p33
      %p35 = scmp.ne.s32.totalorder %s23, %s24
      %p36 = scmp.eq.s32.totalorder %s19, 1
      %p37 = por %p35, %p36
      %p39 = scmp.ne.s32.totalorder %s24, %s38
      %p40 = scmp.eq.s32.totalorder %s19, 0
      %p41 = por %p39, %p40
      %s42 = ssub.s32 %s13, %s20
      %p43 = scmp.eq.s32.totalorder %s42, 0
      %s45 = sadd.s32 %s44, 1
      %s46 = scalar_select %p43, %s44, %s45
      %p49 = pneg %p43
      %p50 = scmp.eq.s32.totalorder %s13, 1
      %p51 = por %p49, %p50
      %p52 = scmp.ne.s32.totalorder %s44, %s47
      %p53 = scmp.eq.s32.totalorder %s13, 0
      %p54 = por %p52, %p53
      %p55 = scmp.ne.s32.totalorder %s44, %s47
      %p56 = scmp.eq.s32.totalorder %s18, 1
      %p57 = por %p55, %p56
      %p58 = scmp.ne.s32.totalorder %s47, %s48
      %p59 = scmp.eq.s32.totalorder %s18, 0
      %p60 = por %p58, %p59
      %p61 = scmp.ne.s32.totalorder %s47, %s48
      %p62 = scmp.eq.s32.totalorder %s19, 1
      %p63 = por %p61, %p62
      %p65 = scmp.ne.s32.totalorder %s48, %s64
      %p66 = scmp.eq.s32.totalorder %s19, 0
      %p67 = por %p65, %p66
      %s69 = sadd.s32 %s68, 1
      %p72 = scmp.eq.s32.totalorder %s13, 1
      %p73 = scmp.ne.s32.totalorder %s68, %s70
      %p74 = scmp.eq.s32.totalorder %s13, 0
      %p75 = por %p73, %p74
      %p76 = scmp.ne.s32.totalorder %s68, %s70
      %p77 = scmp.eq.s32.totalorder %s18, 1
      %p78 = por %p76, %p77
      %p79 = scmp.ne.s32.totalorder %s70, %s71
      %p80 = scmp.eq.s32.totalorder %s18, 0
      %p81 = por %p79, %p80
      %p82 = scmp.ne.s32.totalorder %s70, %s71
      %p83 = scmp.eq.s32.totalorder %s19, 1
      %p84 = por %p82, %p83
      %p86 = scmp.ne.s32.totalorder %s71, %s85
      %p87 = scmp.eq.s32.totalorder %s19, 0
      %p88 = por %p86, %p87
      %s89 = ssub.s32 %s13, %s20
      %p90 = scmp.eq.s32.totalorder %s89, 0
      %s92 = sadd.s32 %s91, 1
      %s93 = scalar_select %p90, %s91, %s92
      %p96 = pneg %p90
      %p97 = scmp.eq.s32.totalorder %s13, 1
      %p98 = por %p96, %p97
      %p99 = scmp.ne.s32.totalorder %s91, %s94
      %p100 = scmp.eq.s32.totalorder %s13, 0
      %p101 = por %p99, %p100
      %p102 = scmp.ne.s32.totalorder %s91, %s94
      %p103 = scmp.eq.s32.totalorder %s18, 1
      %p104 = por %p102, %p103
      %p105 = scmp.ne.s32.totalorder %s94, %s95
      %p106 = scmp.eq.s32.totalorder %s18, 0
      %p107 = por %p105, %p106
      %p108 = scmp.ne.s32.totalorder %s94, %s95
      %p109 = scmp.eq.s32.totalorder %s19, 1
      %p110 = por %p108, %p109
      %p112 = scmp.ne.s32.totalorder %s95, %s111
      %p113 = scmp.eq.s32.totalorder %s19, 0
      %p114 = por %p112, %p113
      %p115 = scmp.le.s32.totalorder 1, %s13
      %p116 = scmp.lt.s32.totalorder %s13, 3
      %p117 = pnand %p115, %p116
      %p118 = pneg %p117
      // Predicated region
      $region9: #{homo_forward.1} parent=5 // pred_check
        _
      $region10: #{homo_forward.1} parent=5 // pred_check_branch
        %120 = sbr.rel (%p117) target = $region12
      $region11: #{homo_forward.1} parent=5 // pred_region
        %s121 = ssub.s32 %s13, 1
        // Predicated region
        $region13: #{homo_forward.1} parent=11 // pred_check
          %p122 = pneg %p34
        $region14: #{homo_forward.1} parent=11 // pred_check_branch
          %124 = sbr.rel (%p122) target = $region16
        $region15: #{homo_forward.1} parent=11 // pred_region
          %s126 = ssub.s32 16, 16
          %127 = vsyncadd [#allocation4], %s126
          %s129 = sshll.u32 %s0, 4
          %s130 = int_to_ptr.vmem [resolvable:$true] %s129
          %132 = dma.vmem_to_smem %s130, 16, [#allocation2], [#allocation4]
        $region16: #{homo_forward.1} parent=11 // pred_fallthru
          _
        // Predicated region
        $region17: #{homo_forward.1} parent=11 // pred_check
          %p133 = pneg %p81
        $region18: #{homo_forward.1} parent=11 // pred_check_branch
          %135 = sbr.rel (%p133) target = $region20
        $region19: #{homo_forward.1} parent=11 // pred_region
          _
        $region20: #{homo_forward.1} parent=11 // pred_fallthru
          _
      $region12: #{homo_forward.1} parent=5 // pred_fallthru
        _
      %p136 = scmp.lt.s32.totalorder %s13, 2
      // Predicated region
      $region21: #{homo_forward.1} parent=5 // pred_check
        %p137 = pneg %p136
      $region22: #{homo_forward.1} parent=5 // pred_check_branch
        %139 = sbr.rel (%p137) target = $region24
      $region23: #{homo_forward.1} parent=5 // pred_region
        // Predicated region
        $region25: #{homo_forward.1} parent=23 // pred_check
          %p140 = pneg %p54
        $region26: #{homo_forward.1} parent=23 // pred_check_branch
          %142 = sbr.rel (%p140) target = $region28
        $region27: #{homo_forward.1} parent=23 // pred_region
          %p143 = scmp.lt.s32.totalorder %s13, 1
          %s144 = scalar_select %p143, %s13, 1
          %s145 = smul.addr %s144, 2
          %s146 = scalar_lea.vmem %s1, %s145
        $region28: #{homo_forward.1} parent=23 // pred_fallthru
          _
      $region24: #{homo_forward.1} parent=5 // pred_fallthru
        _
      %p147 = scmp.le.s32.totalorder 1, %s13
      %p148 = scmp.lt.s32.totalorder %s13, 3
      %p149 = pnand %p147, %p148
      %p150 = pneg %p149
      // Predicated region
      $region29: #{homo_forward.1} parent=5 // pred_check
        _
      $region30: #{homo_forward.1} parent=5 // pred_check_branch
        %152 = sbr.rel (%p149) target = $region32
      $region31: #{homo_forward.1} parent=5 // pred_region
        %s153 = ssub.s32 %s13, 1
        // Predicated region
        $region33: #{homo_forward.1} parent=31 // pred_check
          %p154 = pneg %p34
        $region34: #{homo_forward.1} parent=31 // pred_check_branch
          %156 = sbr.rel (%p154) target = $region36
        $region35: #{homo_forward.1} parent=31 // pred_region
          %157 = dma.done [#allocation4], 16
        $region36: #{homo_forward.1} parent=31 // pred_fallthru
          _
        %158 = sfence
        %p159 = pneg %p34
        %p160 = pneg %p31
        %p161 = scmp.lt.s32.totalorder %s18, 1
        %s162 = scalar_select %p161, %s18, 1
        %s163 = smul.addr %s162, 2
        %s164 = scalar_lea.vmem %s1, %s163
        %p165 = pneg %p60
        %p166 = pneg %p57
        %p167 = pneg %p81
        %p168 = pneg %p78
        %p169 = pneg %p107
        %p170 = pneg %p104
        %s171 = sand.u32 %s94, 1
        %s172 = scalar_lea.sflag [#allocation3], %s171
        %s173 = sand.u32 %s94, 1
        %s174 = scalar_lea.vmem [#allocation5], %s173
        %p175 = scmp.lt.s32.totalorder %s18, 1
        %s176 = scalar_select %p175, %s18, 1
        %s177 = smul.addr %s176, 2
        %s178 = scalar_lea.vmem %s1, %s177
        %s179 = sld [smem:[#allocation2]]
        %s180 = sld [smem:[#allocation2 + $0x1]]
        %v181 = vld [vmem:[%s178] sm:$0x3]
        %v182 = vld [vmem:[%s2] sm:$0xff]
        %v183 = vld [vmem:[%s2 + $0x8] sm:$0xff]
        %v184 = vld [vmem:[%s2 + $0x10] sm:$0xff]
        %v185 = vld [vmem:[%s2 + $0x18] sm:$0xff]
        %v186 = vld [vmem:[%s2 + $0x20] sm:$0xff]
        %v187 = vld [vmem:[%s2 + $0x28] sm:$0xff]
        %v188 = vld [vmem:[%s2 + $0x30] sm:$0xff]
        %v189 = vld [vmem:[%s2 + $0x38] sm:$0xff]
        %v190 = vld [vmem:[%s2 + $0x40] sm:$0xff]
        %v191 = vld [vmem:[%s2 + $0x48] sm:$0xff]
        %v192 = vld [vmem:[%s2 + $0x50] sm:$0xff]
        %v193 = vld [vmem:[%s2 + $0x58] sm:$0xff]
        %v194 = vld [vmem:[%s2 + $0x60] sm:$0xff]
        %v195 = vld [vmem:[%s2 + $0x68] sm:$0xff]
        %v196 = vld [vmem:[%s2 + $0x70] sm:$0xff]
        %v197 = vld [vmem:[%s2 + $0x78] sm:$0xff]
        %199 = vset.pattern.permute.xlu0 0
        %200 = vperm.xlu0 %199, %v194
        %v201 = vpop.permute.xlu0 %200
        %204 = vset.pattern.permute.xlu0 0
        %205 = vperm.xlu0 %204, %v195
        %v206 = vpop.permute.xlu0 %205
        %209 = vset.pattern.permute.xlu0 0
        %210 = vperm.xlu0 %209, %v196
        %v211 = vpop.permute.xlu0 %210
        %214 = vset.pattern.permute.xlu0 0
        %215 = vperm.xlu0 %214, %v197
        %v216 = vpop.permute.xlu0 %215
        %v218 = vlaneseq
        %v219 = vshrl.u32 %v218, 7
        %v220 = vsub.s32 0, %v219
        %v221 = vrot.slane %v181, %v220
        %v222 = vmul.f32 %v201, %v221
        %v223 = vmul.f32 %v206, %v221
        %v224 = vmul.f32 %v211, %v221
        %v225 = vmul.f32 %v216, %v221
        %226 = vset.pattern.permute.xlu0 2
        %227 = vperm.xlu0 %226, %v194
        %v228 = vpop.permute.xlu0 %227
        %230 = vset.pattern.permute.xlu0 2
        %231 = vperm.xlu0 %230, %v195
        %v232 = vpop.permute.xlu0 %231
        %234 = vset.pattern.permute.xlu0 2
        %235 = vperm.xlu0 %234, %v196
        %v236 = vpop.permute.xlu0 %235
        %238 = vset.pattern.permute.xlu0 2
        %239 = vperm.xlu0 %238, %v197
        %v240 = vpop.permute.xlu0 %239
        %v242 = vadd.f32 %v228, %v222
        %v243 = vadd.f32 %v232, %v223
        %v244 = vadd.f32 %v236, %v224
        %v245 = vadd.f32 %v240, %v225
        %246 = vset.pattern.permute.xlu0 1
        %247 = vperm.xlu0 %246, %v194
        %v248 = vpop.permute.xlu0 %247
        %250 = vset.pattern.permute.xlu0 1
        %251 = vperm.xlu0 %250, %v195
        %v252 = vpop.permute.xlu0 %251
        %254 = vset.pattern.permute.xlu0 1
        %255 = vperm.xlu0 %254, %v196
        %v256 = vpop.permute.xlu0 %255
        %258 = vset.pattern.permute.xlu0 1
        %259 = vperm.xlu0 %258, %v197
        %v260 = vpop.permute.xlu0 %259
        %v262 = vlaneseq
        %v263 = vshrl.u32 %v262, 7
        %v264 = vsub.s32 1, %v263
        %v265 = vrot.slane %v181, %v264
        %v266 = vmul.f32 %v248, %v265
        %v267 = vmul.f32 %v252, %v265
        %v268 = vmul.f32 %v256, %v265
        %v269 = vmul.f32 %v260, %v265
        %v270 = vadd.f32 %v242, %v266
        %v271 = vadd.f32 %v243, %v267
        %v272 = vadd.f32 %v244, %v268
        %v273 = vadd.f32 %v245, %v269
        %v274 = vstv %s179
        %v275 = vmul.f32 %v274, %v270
        %v276 = vmul.f32 %v274, %v271
        %v277 = vmul.f32 %v274, %v272
        %v278 = vmul.f32 %v274, %v273
        %v279 = vtanh.pop %v275
        %v280 = vtanh.pop %v276
        %v281 = vtanh.pop %v277
        %v282 = vtanh.pop %v278
        %283 = vset.pattern.permute.xlu0 3
        %284 = vperm.xlu0 %283, %v194
        %v285 = vpop.permute.xlu0 %284
        %287 = vset.pattern.permute.xlu0 3
        %288 = vperm.xlu0 %287, %v195
        %v289 = vpop.permute.xlu0 %288
        %291 = vset.pattern.permute.xlu0 3
        %292 = vperm.xlu0 %291, %v196
        %v293 = vpop.permute.xlu0 %292
        %295 = vset.pattern.permute.xlu0 3
        %296 = vperm.xlu0 %295, %v197
        %v297 = vpop.permute.xlu0 %296
        %vm299 = vcmask 261120
        %v301 = vsel %vm299, %v182, 0
        %v304 = vsel %vm299, %v183, 0
        %v307 = vsel %vm299, %v184, 0
        %v310 = vsel %vm299, %v185, 0
        %312 = vmatprep.subr.mxu0 0.0
        %313 = vmatpush1.msra.mxu0 0.0
        %314 = vmatprep.subr.mxu0 0.0
        %315 = vmatpush1.msra.mxu0 0.0
        %316 = vmatprep.subr.mxu0 0.0
        %317 = vmatpush1.msra.mxu0 0.0
        %318 = vmatprep.subr.mxu0 0.0
        %319 = vmatpush1.msra.mxu0 0.0
        %320 = vmatprep.subr.mxu0 0.0
        %321 = vmatpush1.msra.mxu0 0.0
        %322 = vmatprep.subr.mxu0 0.0
        %323 = vmatpush1.msra.mxu0 0.0
        %324 = vmatprep.subr.mxu0 0.0
        %325 = vmatpush1.msra.mxu0 0.0
        %326 = vmatprep.subr.mxu0 0.0
        %327 = vmatpush1.msra.mxu0 0.0
        %328 = vmatprep.subr.mxu0 0.0
        %329 = vmatpush1.msra.mxu0 0.0
        %330 = vmatprep.subr.mxu0 0.0
        %331 = vmatpush1.msra.mxu0 0.0
        %332 = vmatprep.subr.mxu0 0.0
        %333 = vmatpush1.msra.mxu0 0.0
        %334 = vmatprep.subr.mxu0 0.0
        %335 = vmatpush1.msra.mxu0 0.0
        %336 = vmatprep.subr.mxu0 0.0
        %337 = vmatpush1.msra.mxu0 %v282
        %338 = vmatprep.subr.mxu0 0.0
        %339 = vmatpush1.msra.mxu0 %v281
        %340 = vmatprep.subr.mxu0 0.0
        %341 = vmatpush1.msra.mxu0 %v280
        %342 = vmatprep.subr.mxu0 0.0
        %343 = vmatpush1.msra.mxu0 %v279
        %344 = vmatprep.subr.mxu0 0.0
        %345 = vmatpush2.msra.mxu0 0.0
        %346 = vmatprep.subr.mxu0 0.0
        %347 = vmatpush2.msra.mxu0 0.0
        %348 = vmatprep.subr.mxu0 0.0
        %349 = vmatpush2.msra.mxu0 0.0
        %350 = vmatprep.subr.mxu0 0.0
        %351 = vmatpush2.msra.mxu0 0.0
        %352 = vmatprep.subr.mxu0 0.0
        %353 = vmatpush2.msra.mxu0 0.0
        %354 = vmatprep.subr.mxu0 0.0
        %355 = vmatpush2.msra.mxu0 0.0
        %356 = vmatprep.subr.mxu0 0.0
        %357 = vmatpush2.msra.mxu0 0.0
        %358 = vmatprep.subr.mxu0 0.0
        %359 = vmatpush2.msra.mxu0 0.0
        %360 = vmatprep.subr.mxu0 0.0
        %361 = vmatpush2.msra.mxu0 0.0
        %362 = vmatprep.subr.mxu0 0.0
        %363 = vmatpush2.msra.mxu0 0.0
        %364 = vmatprep.subr.mxu0 0.0
        %365 = vmatpush2.msra.mxu0 0.0
        %366 = vmatprep.subr.mxu0 0.0
        %367 = vmatpush2.msra.mxu0 0.0
        %368 = vmatprep.subr.mxu0 0.0
        %369 = vmatpush2.msra.mxu0 0.0
        %370 = vmatprep.subr.mxu0 0.0
        %371 = vmatpush2.msra.mxu0 0.0
        %372 = vmatprep.subr.mxu0 0.0
        %373 = vmatpush2.msra.mxu0 0.0
        %374 = vmatprep.subr.mxu0 0.0
        %375 = vmatpush2.msra.mxu0 0.0
        %376 = vmatprep.mubr.f32.mxu0 0.0
        %377 = vmatmul.mubr.f32.gmra.mxu0 %v301
        %v378 = vpop.f32.mrf.mxu0
        %v379 = vadd.f32 %v285, %v378
        %v380 = vpop.f32.mrf.mxu0
        %381 = vmatprep.mubr.f32.mxu0 0.0
        %382 = vmatmul.mubr.f32.gmra.mxu0 %v304
        %v383 = vpop.f32.mrf.mxu0
        %v384 = vadd.f32 %v289, %v383
        %v385 = vpop.f32.mrf.mxu0
        %386 = vmatprep.mubr.f32.mxu0 0.0
        %387 = vmatmul.mubr.f32.gmra.mxu0 %v307
        %v388 = vpop.f32.mrf.mxu0
        %v389 = vadd.f32 %v293, %v388
        %v390 = vpop.f32.mrf.mxu0
        %391 = vmatprep.mubr.f32.mxu0 0.0
        %392 = vmatmul.mubr.f32.gmra.mxu0 %v310
        %v393 = vpop.f32.mrf.mxu0
        %v394 = vadd.f32 %v297, %v393
        %v395 = vpop.f32.mrf.mxu0
        %396 = vdwg.mxu0
        %v397 = vmul.f32 %v274, %v379
        %v398 = vmul.f32 %v274, %v384
        %v399 = vmul.f32 %v274, %v389
        %v400 = vmul.f32 %v274, %v394
        %v401 = vtanh.pop %v397
        %v402 = vtanh.pop %v398
        %v403 = vtanh.pop %v399
        %v404 = vtanh.pop %v400
        %405 = vset.pattern.permute.xlu0 4
        %406 = vperm.xlu0 %405, %v194
        %v407 = vpop.permute.xlu0 %406
        %409 = vset.pattern.permute.xlu0 4
        %410 = vperm.xlu0 %409, %v195
        %v411 = vpop.permute.xlu0 %410
        %413 = vset.pattern.permute.xlu0 4
        %414 = vperm.xlu0 %413, %v196
        %v415 = vpop.permute.xlu0 %414
        %417 = vset.pattern.permute.xlu0 4
        %418 = vperm.xlu0 %417, %v197
        %v419 = vpop.permute.xlu0 %418
        %v422 = vsel %vm299, %v186, 0
        %v425 = vsel %vm299, %v187, 0
        %v428 = vsel %vm299, %v188, 0
        %v431 = vsel %vm299, %v189, 0
        %433 = vmatprep.subr.mxu0 0.0
        %434 = vmatpush1.msra.mxu0 0.0
        %435 = vmatprep.subr.mxu0 0.0
        %436 = vmatpush1.msra.mxu0 0.0
        %437 = vmatprep.subr.mxu0 0.0
        %438 = vmatpush1.msra.mxu0 0.0
        %439 = vmatprep.subr.mxu0 0.0
        %440 = vmatpush1.msra.mxu0 0.0
        %441 = vmatprep.subr.mxu0 0.0
        %442 = vmatpush1.msra.mxu0 0.0
        %443 = vmatprep.subr.mxu0 0.0
        %444 = vmatpush1.msra.mxu0 0.0
        %445 = vmatprep.subr.mxu0 0.0
        %446 = vmatpush1.msra.mxu0 0.0
        %447 = vmatprep.subr.mxu0 0.0
        %448 = vmatpush1.msra.mxu0 0.0
        %449 = vmatprep.subr.mxu0 0.0
        %450 = vmatpush1.msra.mxu0 0.0
        %451 = vmatprep.subr.mxu0 0.0
        %452 = vmatpush1.msra.mxu0 0.0
        %453 = vmatprep.subr.mxu0 0.0
        %454 = vmatpush1.msra.mxu0 0.0
        %455 = vmatprep.subr.mxu0 0.0
        %456 = vmatpush1.msra.mxu0 0.0
        %457 = vmatprep.subr.mxu0 0.0
        %458 = vmatpush1.msra.mxu0 %v404
        %459 = vmatprep.subr.mxu0 0.0
        %460 = vmatpush1.msra.mxu0 %v403
        %461 = vmatprep.subr.mxu0 0.0
        %462 = vmatpush1.msra.mxu0 %v402
        %463 = vmatprep.subr.mxu0 0.0
        %464 = vmatpush1.msra.mxu0 %v401
        %465 = vmatprep.subr.mxu0 0.0
        %466 = vmatpush2.msra.mxu0 0.0
        %467 = vmatprep.subr.mxu0 0.0
        %468 = vmatpush2.msra.mxu0 0.0
        %469 = vmatprep.subr.mxu0 0.0
        %470 = vmatpush2.msra.mxu0 0.0
        %471 = vmatprep.subr.mxu0 0.0
        %472 = vmatpush2.msra.mxu0 0.0
        %473 = vmatprep.subr.mxu0 0.0
        %474 = vmatpush2.msra.mxu0 0.0
        %475 = vmatprep.subr.mxu0 0.0
        %476 = vmatpush2.msra.mxu0 0.0
        %477 = vmatprep.subr.mxu0 0.0
        %478 = vmatpush2.msra.mxu0 0.0
        %479 = vmatprep.subr.mxu0 0.0
        %480 = vmatpush2.msra.mxu0 0.0
        %481 = vmatprep.subr.mxu0 0.0
        %482 = vmatpush2.msra.mxu0 0.0
        %483 = vmatprep.subr.mxu0 0.0
        %484 = vmatpush2.msra.mxu0 0.0
        %485 = vmatprep.subr.mxu0 0.0
        %486 = vmatpush2.msra.mxu0 0.0
        %487 = vmatprep.subr.mxu0 0.0
        %488 = vmatpush2.msra.mxu0 0.0
        %489 = vmatprep.subr.mxu0 0.0
        %490 = vmatpush2.msra.mxu0 0.0
        %491 = vmatprep.subr.mxu0 0.0
        %492 = vmatpush2.msra.mxu0 0.0
        %493 = vmatprep.subr.mxu0 0.0
        %494 = vmatpush2.msra.mxu0 0.0
        %495 = vmatprep.subr.mxu0 0.0
        %496 = vmatpush2.msra.mxu0 0.0
        %497 = vmatprep.mubr.f32.mxu0 0.0
        %498 = vmatmul.mubr.f32.gmra.mxu0 %v422
        %v499 = vpop.f32.mrf.mxu0
        %v500 = vadd.f32 %v407, %v499
        %v501 = vpop.f32.mrf.mxu0
        %502 = vmatprep.mubr.f32.mxu0 0.0
        %503 = vmatmul.mubr.f32.gmra.mxu0 %v425
        %v504 = vpop.f32.mrf.mxu0
        %v505 = vadd.f32 %v411, %v504
        %v506 = vpop.f32.mrf.mxu0
        %507 = vmatprep.mubr.f32.mxu0 0.0
        %508 = vmatmul.mubr.f32.gmra.mxu0 %v428
        %v509 = vpop.f32.mrf.mxu0
        %v510 = vadd.f32 %v415, %v509
        %v511 = vpop.f32.mrf.mxu0
        %512 = vmatprep.mubr.f32.mxu0 0.0
        %513 = vmatmul.mubr.f32.gmra.mxu0 %v431
        %v514 = vpop.f32.mrf.mxu0
        %v515 = vadd.f32 %v419, %v514
        %v516 = vpop.f32.mrf.mxu0
        %517 = vdwg.mxu0
        %v518 = vmul.f32 %v274, %v500
        %v519 = vmul.f32 %v274, %v505
        %v520 = vmul.f32 %v274, %v510
        %v521 = vmul.f32 %v274, %v515
        %v522 = vtanh.pop %v518
        %v523 = vtanh.pop %v519
        %v524 = vtanh.pop %v520
        %v525 = vtanh.pop %v521
        %526 = vset.pattern.permute.xlu0 5
        %527 = vperm.xlu0 %526, %v194
        %v528 = vpop.permute.xlu0 %527
        %530 = vset.pattern.permute.xlu0 5
        %531 = vperm.xlu0 %530, %v195
        %v532 = vpop.permute.xlu0 %531
        %534 = vset.pattern.permute.xlu0 5
        %535 = vperm.xlu0 %534, %v196
        %v536 = vpop.permute.xlu0 %535
        %538 = vset.pattern.permute.xlu0 5
        %539 = vperm.xlu0 %538, %v197
        %v540 = vpop.permute.xlu0 %539
        %v543 = vsel %vm299, %v190, 0
        %v546 = vsel %vm299, %v191, 0
        %v549 = vsel %vm299, %v192, 0
        %v552 = vsel %vm299, %v193, 0
        %554 = vmatprep.subr.mxu0 0.0
        %555 = vmatpush1.msra.mxu0 0.0
        %556 = vmatprep.subr.mxu0 0.0
        %557 = vmatpush1.msra.mxu0 0.0
        %558 = vmatprep.subr.mxu0 0.0
        %559 = vmatpush1.msra.mxu0 0.0
        %560 = vmatprep.subr.mxu0 0.0
        %561 = vmatpush1.msra.mxu0 0.0
        %562 = vmatprep.subr.mxu0 0.0
        %563 = vmatpush1.msra.mxu0 0.0
        %564 = vmatprep.subr.mxu0 0.0
        %565 = vmatpush1.msra.mxu0 0.0
        %566 = vmatprep.subr.mxu0 0.0
        %567 = vmatpush1.msra.mxu0 0.0
        %568 = vmatprep.subr.mxu0 0.0
        %569 = vmatpush1.msra.mxu0 0.0
        %570 = vmatprep.subr.mxu0 0.0
        %571 = vmatpush1.msra.mxu0 0.0
        %572 = vmatprep.subr.mxu0 0.0
        %573 = vmatpush1.msra.mxu0 0.0
        %574 = vmatprep.subr.mxu0 0.0
        %575 = vmatpush1.msra.mxu0 0.0
        %576 = vmatprep.subr.mxu0 0.0
        %577 = vmatpush1.msra.mxu0 0.0
        %578 = vmatprep.subr.mxu0 0.0
        %579 = vmatpush1.msra.mxu0 %v525
        %580 = vmatprep.subr.mxu0 0.0
        %581 = vmatpush1.msra.mxu0 %v524
        %582 = vmatprep.subr.mxu0 0.0
        %583 = vmatpush1.msra.mxu0 %v523
        %584 = vmatprep.subr.mxu0 0.0
        %585 = vmatpush1.msra.mxu0 %v522
        %586 = vmatprep.subr.mxu0 0.0
        %587 = vmatpush2.msra.mxu0 0.0
        %588 = vmatprep.subr.mxu0 0.0
        %589 = vmatpush2.msra.mxu0 0.0
        %590 = vmatprep.subr.mxu0 0.0
        %591 = vmatpush2.msra.mxu0 0.0
        %592 = vmatprep.subr.mxu0 0.0
        %593 = vmatpush2.msra.mxu0 0.0
        %594 = vmatprep.subr.mxu0 0.0
        %595 = vmatpush2.msra.mxu0 0.0
        %596 = vmatprep.subr.mxu0 0.0
        %597 = vmatpush2.msra.mxu0 0.0
        %598 = vmatprep.subr.mxu0 0.0
        %599 = vmatpush2.msra.mxu0 0.0
        %600 = vmatprep.subr.mxu0 0.0
        %601 = vmatpush2.msra.mxu0 0.0
        %602 = vmatprep.subr.mxu0 0.0
        %603 = vmatpush2.msra.mxu0 0.0
        %604 = vmatprep.subr.mxu0 0.0
        %605 = vmatpush2.msra.mxu0 0.0
        %606 = vmatprep.subr.mxu0 0.0
        %607 = vmatpush2.msra.mxu0 0.0
        %608 = vmatprep.subr.mxu0 0.0
        %609 = vmatpush2.msra.mxu0 0.0
        %610 = vmatprep.subr.mxu0 0.0
        %611 = vmatpush2.msra.mxu0 0.0
        %612 = vmatprep.subr.mxu0 0.0
        %613 = vmatpush2.msra.mxu0 0.0
        %614 = vmatprep.subr.mxu0 0.0
        %615 = vmatpush2.msra.mxu0 0.0
        %616 = vmatprep.subr.mxu0 0.0
        %617 = vmatpush2.msra.mxu0 0.0
        %618 = vmatprep.mubr.f32.mxu0 0.0
        %619 = vmatmul.mubr.f32.gmra.mxu0 %v543
        %v620 = vpop.f32.mrf.mxu0
        %v621 = vadd.f32 %v528, %v620
        %v622 = vpop.f32.mrf.mxu0
        %623 = vmatprep.mubr.f32.mxu0 0.0
        %624 = vmatmul.mubr.f32.gmra.mxu0 %v546
        %v625 = vpop.f32.mrf.mxu0
        %v626 = vadd.f32 %v532, %v625
        %v627 = vpop.f32.mrf.mxu0
        %628 = vmatprep.mubr.f32.mxu0 0.0
        %629 = vmatmul.mubr.f32.gmra.mxu0 %v549
        %v630 = vpop.f32.mrf.mxu0
        %v631 = vadd.f32 %v536, %v630
        %v632 = vpop.f32.mrf.mxu0
        %633 = vmatprep.mubr.f32.mxu0 0.0
        %634 = vmatmul.mubr.f32.gmra.mxu0 %v552
        %v635 = vpop.f32.mrf.mxu0
        %v636 = vadd.f32 %v540, %v635
        %v637 = vpop.f32.mrf.mxu0
        %638 = vdwg.mxu0
        %v639 = vmul.f32 %v274, %v621
        %v640 = vmul.f32 %v274, %v626
        %v641 = vmul.f32 %v274, %v631
        %v642 = vmul.f32 %v274, %v636
        %v643 = vtanh.pop %v639
        %v644 = vtanh.pop %v640
        %v645 = vtanh.pop %v641
        %v646 = vtanh.pop %v642
        %647 = vset.pattern.permute.xlu0 6
        %648 = vperm.xlu0 %647, %v194
        %v649 = vpop.permute.xlu0 %648
        %651 = vset.pattern.permute.xlu0 6
        %652 = vperm.xlu0 %651, %v195
        %v653 = vpop.permute.xlu0 %652
        %655 = vset.pattern.permute.xlu0 6
        %656 = vperm.xlu0 %655, %v196
        %v657 = vpop.permute.xlu0 %656
        %659 = vset.pattern.permute.xlu0 6
        %660 = vperm.xlu0 %659, %v197
        %v661 = vpop.permute.xlu0 %660
        %v663 = vmul.f32 %v649, %v643
        %v664 = vmul.f32 %v653, %v644
        %v665 = vmul.f32 %v657, %v645
        %v666 = vmul.f32 %v661, %v646
        %v667 = vadd.f32 %v663, %v664
        %v668 = vadd.f32 %v667, %v665
        %v669 = vadd.f32 %v668, %v666
        %v670 = vrot.slane %v669, 4
        %v671 = vadd.f32 %v669, %v670
        %v672 = vrot.slane %v671, 2
        %v673 = vadd.f32 %v671, %v672
        %v674 = vrot.slane %v673, 1
        %v675 = vadd.f32 %v673, %v674
        %v676 = vstv %s180
        %v677 = vadd.f32 %v675, %v676
        %v678 = vmul.f32 %v274, %v677
        %679 = vst [vmem:[%s174] sm:$0x1] %v678
        %s680 = sand.u32 %s94, 1
        %s681 = scalar_lea.sflag [#allocation3], %s680
        %s682 = sand.u32 %s94, 1
        %s683 = scalar_lea.vmem [#allocation5], %s682
        // Predicated region
        $region37: #{homo_forward.1} parent=31 // pred_check
          %p684 = pneg %p104
        $region38: #{homo_forward.1} parent=31 // pred_check_branch
          %686 = sbr.rel (%p684) target = $region40
        $region39: #{homo_forward.1} parent=31 // pred_region
          %s688 = ssub.s32 16, 16
          %689 = vsyncadd %s681, %s688
          %s690 = smul.addr %s18, 16
          %s691 = scalar_lea.hbm %s3, %s690
          %s693 = sshll.u32 %s683, 4
          %s694 = int_to_ptr.vmem [resolvable:$true] %s693
          %696 = dma.vmem_to_hbm [thread:$0]  %s694, 16, %s691, %s681
        $region40: #{homo_forward.1} parent=31 // pred_fallthru
          _
      $region32: #{homo_forward.1} parent=5 // pred_fallthru
        _
      %p697 = scmp.le.s32.totalorder 2, %s13
      // Predicated region
      $region41: #{homo_forward.1} parent=5 // pred_check
        %p698 = pneg %p697
      $region42: #{homo_forward.1} parent=5 // pred_check_branch
        %700 = sbr.rel (%p698) target = $region44
      $region43: #{homo_forward.1} parent=5 // pred_region
        %s701 = ssub.s32 %s13, 2
        // Predicated region
        $region45: #{homo_forward.1} parent=43 // pred_check
          %p702 = pneg %p110
        $region46: #{homo_forward.1} parent=43 // pred_check_branch
          %704 = sbr.rel (%p702) target = $region48
        $region47: #{homo_forward.1} parent=43 // pred_region
          %s705 = sand.u32 %s95, 1
          %s706 = scalar_lea.sflag [#allocation3], %s705
          %s707 = sand.u32 %s95, 1
          %s708 = scalar_lea.vmem [#allocation5], %s707
          %709 = dma.done %s706, 16
        $region48: #{homo_forward.1} parent=43 // pred_fallthru
          _
      $region44: #{homo_forward.1} parent=5 // pred_fallthru
        _
    $region6: #{homo_forward.1} parent=1 // loop_footer
      %s17 = sadd.s32 1, %s13
    $region7: #{homo_forward.1} parent=1 // loop_footer_branch
      %12 = sbr.rel target = $region3
    $region8: #{homo_forward.1} parent=1 // loop_exit
      _
    %710 = vsyncpa [#allocation3], 1
    %s711 = scalar_lea.sflag [#allocation3], 1
    %712 = vsyncpa %s711, 1
    %713 = vsyncpa [#allocation4], 1
    %s714 = scalar_lea.sflag [#allocation4], 1
    %715 = vsyncpa %s714, 1

</llo_original>
